<compile_context>
chip_gen: v5e
topology: v5e:2x2
jax: 0.10.0
libtpu: 0.0.40
codegen_flags: <defaults>
</compile_context>

<pallas_src>
import functools

import jax
import jax.numpy as jnp
from jax.experimental import pallas as pl
from jax.experimental.pallas import tpu as pltpu

# Per-column trend-table sizes, in time-mark column order (freq='h'):
#   col0 year(3), col1 quarter(4), col2 month(12), col3 day(31),
#   col4 week(7),  col5 hour(24),  col6 day_of_year(366)
TABLE_SIZES = (3, 4, 12, 31, 7, 24, 366)
TABLE_OFFSETS = tuple(int(sum(TABLE_SIZES[:k])) for k in range(len(TABLE_SIZES)))
R_TOTAL = int(sum(TABLE_SIZES))   # 447 ; padded-table row 447 holds the bias
R_PAD = 512                       # pad MXU K dim to 4 * 128 lanes
N_MARKS = len(TABLE_SIZES)
# TODO(synk): freq='t' adds a minute_trend table (gathered, per the PyTorch code,
# with the same column 6) — only the default freq='h' path is implemented here.


def _trend_kernel(marks_ref, table_ref, out_ref, *, n_rows, n_cols):
    # marks_ref: (n_rows, n_cols) int32 — per-column table offsets already added
    #            in the wrapper; last column is the constant bias-row index (447).
    # table_ref: (R_PAD, C) f32 ; out_ref: (n_rows, C) f32
    marks = marks_ref[...]
    iota_r = jax.lax.broadcasted_iota(jnp.int32, (n_rows, R_PAD), 1)
    # Offsets make the per-column index ranges disjoint, so the union of the
    # one-hots equals their sum: chain boolean ORs and cast to f32 once (VPU
    # compare/or only; single f32 conversion).
    hit = iota_r == marks[:, 0:1]
    for k in range(1, n_cols):
        hit = jnp.logical_or(hit, iota_r == marks[:, k:k + 1])
    counts = hit.astype(jnp.float32)
    # One MXU pass performs all 7 table lookups + the bias broadcast.
    out_ref[...] = jnp.dot(counts, table_ref[...],
                           preferred_element_type=jnp.float32)


def fbnet_forward(batch_x_mark, batch_y_mark, tables, bias, *, row_tile=256):
    """Reproduces Model.forward: returns trends_y of shape (B, pred_len, C).

    trends_y depends only on batch_y_mark; batch_x_mark is accepted to mirror
    the PyTorch signature but its rows are discarded by forward.
    """
    del batch_x_mark
    marks = batch_y_mark.astype(jnp.int32)                  # (B, Lp, 7)
    B, Lp, n_marks = marks.shape
    C = bias.shape[0]

    # Concatenated trend table, bias appended as row R_TOTAL, zero-padded to R_PAD.
    table = jnp.concatenate(
        [t.astype(jnp.float32) for t in tables]
        + [bias.reshape(1, C).astype(jnp.float32)], axis=0)          # (448, C)
    table = jnp.pad(table, ((0, R_PAD - table.shape[0]), (0, 0)))    # (512, C)

    # Fold batch into rows, pre-add per-column offsets (hoisted out of the
    # kernel), append the constant bias-row column.
    offsets = jnp.asarray(TABLE_OFFSETS, dtype=jnp.int32)
    flat = marks.reshape(B * Lp, n_marks) + offsets                  # (B*Lp, 7)
    flat = jnp.concatenate(
        [flat, jnp.full((B * Lp, 1), R_TOTAL, dtype=jnp.int32)], axis=-1)

    L = B * Lp
    n_cols = n_marks + 1
    if L <= row_tile:
        tile = max(8, -(-L // 8) * 8)        # single grid step, 8-sublane aligned
    else:
        tile = row_tile                      # tile rows; table stays VMEM-resident
    grid_rows = -(-L // tile)
    L_pad = grid_rows * tile
    if L_pad != L:
        flat = jnp.pad(flat, ((0, L_pad - L), (0, 0)))

    kernel = functools.partial(_trend_kernel, n_rows=tile, n_cols=n_cols)
    out = pl.pallas_call(
        kernel,
        out_shape=jax.ShapeDtypeStruct((L_pad, C), jnp.float32),
        grid=(grid_rows,),
        in_specs=[
            pl.BlockSpec((tile, n_cols), lambda i: (i, 0)),
            pl.BlockSpec((R_PAD, C), lambda i: (0, 0)),   # invariant across steps
        ],
        out_specs=pl.BlockSpec((tile, C), lambda i: (i, 0)),
        compiler_params=pltpu.CompilerParams(
            dimension_semantics=("parallel",)),
    )(flat, table)

    # NOTE: out-of-range mark indices contribute zero (one-hot never matches)
    # instead of raising like a PyTorch index would.
    return out[:L].reshape(B, Lp, C)


def reference_forward(batch_x_mark, batch_y_mark, tables, bias):
    """Pure-JAX reference mirroring the PyTorch semantics."""
    marks = jnp.concatenate([batch_x_mark, batch_y_mark], axis=1).astype(jnp.int32)
    trends = sum(tables[k][marks[:, :, k]] for k in range(len(TABLE_SIZES)))
    trends = trends + bias
    return trends[:, batch_x_mark.shape[1]:, :]


if __name__ == "__main__":
    # Small, deterministic config: seq_len=12, pred_len=8, enc_in(channels)=8, batch=2.
    B, seq_len, pred_len, C = 2, 12, 8, 8
    key = jax.random.PRNGKey(0)

    keys = jax.random.split(key, len(TABLE_SIZES) + 3)
    tables = [
        0.1 * jax.random.normal(keys[k], (TABLE_SIZES[k], C), dtype=jnp.float32)
        for k in range(len(TABLE_SIZES))
    ]
    bias = 0.1 * jax.random.normal(keys[-3], (C,), dtype=jnp.float32)

    # Deterministic time marks with valid ranges per column.
    def make_marks(k, L):
        cols = []
        subkeys = jax.random.split(k, len(TABLE_SIZES))
        for i, sz in enumerate(TABLE_SIZES):
            cols.append(jax.random.randint(subkeys[i], (B, L, 1), 0, sz, dtype=jnp.int32))
        return jnp.concatenate(cols, axis=-1)  # (B, L, 7)

    batch_x_mark = make_marks(keys[-2], seq_len)
    batch_y_mark = make_marks(keys[-1], pred_len)

    out = fbnet_forward(batch_x_mark, batch_y_mark, tables, bias)
    out = jax.block_until_ready(out)

    ref = reference_forward(batch_x_mark, batch_y_mark, tables, bias)
    assert out.shape == (B, pred_len, C), out.shape
    assert jnp.allclose(out, ref, atol=1e-5, rtol=1e-5), "mismatch vs reference"

    print("KERNEL_OK")
</pallas_src>

<mosaic_0001>
module attributes {stable_mosaic.version = 11 : i64} {
  func.func @_trend_kernel(%arg0: i32, %arg1: memref<16x8xi32, #tpu.memory_space<vmem>>, %arg2: memref<512x8xf32, #tpu.memory_space<vmem>>, %arg3: memref<16x8xf32, #tpu.memory_space<vmem>>) attributes {dimension_semantics = [#tpu.dimension_semantics<parallel>], iteration_bounds = array<i64: 1>, scalar_prefetch = 0 : i64, scratch_operands = 0 : i64, tpu.core_type = #tpu.core_type<tc>, window_params = [{transform_indices = @transform_0, window_bounds = array<i64: 16, 8>}, {pipeline_mode = #tpu.pipeline_mode<synchronous>, transform_indices = @transform_1, window_bounds = array<i64: 512, 8>}, {transform_indices = @transform_2, window_bounds = array<i64: 16, 8>}]} {
    %c0 = arith.constant 0 : index
    %c0_0 = arith.constant 0 : index
    %0 = vector.load %arg1[%c0, %c0_0] : memref<16x8xi32, #tpu.memory_space<vmem>>, vector<16x8xi32>
    %1 = tpu.iota {dimensions = array<i32: 1>} : vector<16x512xi32>
    %2 = vector.extract_strided_slice %0 {offsets = [0, 0], sizes = [16, 1], strides = [1, 1]} : vector<16x8xi32> to vector<16x1xi32>
    %3 = vector.broadcast %2 : vector<16x1xi32> to vector<16x512xi32>
    %4 = arith.cmpi eq, %1, %3 : vector<16x512xi32>
    %5 = vector.extract_strided_slice %0 {offsets = [0, 1], sizes = [16, 1], strides = [1, 1]} : vector<16x8xi32> to vector<16x1xi32>
    %6 = vector.broadcast %5 : vector<16x1xi32> to vector<16x512xi32>
    %7 = arith.cmpi eq, %1, %6 : vector<16x512xi32>
    %8 = arith.ori %4, %7 : vector<16x512xi1>
    %9 = vector.extract_strided_slice %0 {offsets = [0, 2], sizes = [16, 1], strides = [1, 1]} : vector<16x8xi32> to vector<16x1xi32>
    %10 = vector.broadcast %9 : vector<16x1xi32> to vector<16x512xi32>
    %11 = arith.cmpi eq, %1, %10 : vector<16x512xi32>
    %12 = arith.ori %8, %11 : vector<16x512xi1>
    %13 = vector.extract_strided_slice %0 {offsets = [0, 3], sizes = [16, 1], strides = [1, 1]} : vector<16x8xi32> to vector<16x1xi32>
    %14 = vector.broadcast %13 : vector<16x1xi32> to vector<16x512xi32>
    %15 = arith.cmpi eq, %1, %14 : vector<16x512xi32>
    %16 = arith.ori %12, %15 : vector<16x512xi1>
    %17 = vector.extract_strided_slice %0 {offsets = [0, 4], sizes = [16, 1], strides = [1, 1]} : vector<16x8xi32> to vector<16x1xi32>
    %18 = vector.broadcast %17 : vector<16x1xi32> to vector<16x512xi32>
    %19 = arith.cmpi eq, %1, %18 : vector<16x512xi32>
    %20 = arith.ori %16, %19 : vector<16x512xi1>
    %21 = vector.extract_strided_slice %0 {offsets = [0, 5], sizes = [16, 1], strides = [1, 1]} : vector<16x8xi32> to vector<16x1xi32>
    %22 = vector.broadcast %21 : vector<16x1xi32> to vector<16x512xi32>
    %23 = arith.cmpi eq, %1, %22 : vector<16x512xi32>
    %24 = arith.ori %20, %23 : vector<16x512xi1>
    %25 = vector.extract_strided_slice %0 {offsets = [0, 6], sizes = [16, 1], strides = [1, 1]} : vector<16x8xi32> to vector<16x1xi32>
    %26 = vector.broadcast %25 : vector<16x1xi32> to vector<16x512xi32>
    %27 = arith.cmpi eq, %1, %26 : vector<16x512xi32>
    %28 = arith.ori %24, %27 : vector<16x512xi1>
    %29 = vector.extract_strided_slice %0 {offsets = [0, 7], sizes = [16, 1], strides = [1, 1]} : vector<16x8xi32> to vector<16x1xi32>
    %30 = vector.broadcast %29 : vector<16x1xi32> to vector<16x512xi32>
    %31 = arith.cmpi eq, %1, %30 : vector<16x512xi32>
    %32 = arith.ori %28, %31 : vector<16x512xi1>
    %33 = arith.extui %32 : vector<16x512xi1> to vector<16x512xi32>
    %34 = arith.sitofp %33 : vector<16x512xi32> to vector<16x512xf32>
    %c0_1 = arith.constant 0 : index
    %c0_2 = arith.constant 0 : index
    %35 = vector.load %arg2[%c0_1, %c0_2] : memref<512x8xf32, #tpu.memory_space<vmem>>, vector<512x8xf32>
    %cst = arith.constant dense<0.000000e+00> : vector<16x8xf32>
    %36 = tpu.matmul %34, %35, %cst {dimension_numbers = #tpu.dot_dimension_numbers<[1], [0], [0], [1], [0, 0, 1, 1], [], []>} : vector<16x512xf32>, vector<512x8xf32>, vector<16x8xf32> -> vector<16x8xf32>
    %c0_3 = arith.constant 0 : index
    %c0_4 = arith.constant 0 : index
    %37 = vector.load %arg3[%c0_3, %c0_4] : memref<16x8xf32, #tpu.memory_space<vmem>>, vector<16x8xf32>
    tpu.vector_store %arg3[%c0_3, %c0_4], %36 {strides = array<i32>} : memref<16x8xf32, #tpu.memory_space<vmem>>, vector<16x8xf32>,
    return
  }
  func.func @transform_0(%arg0: i32) -> (i32, i32) {
    %c0_i32 = arith.constant 0 : i32
    %c0_i32_0 = arith.constant 0 : i32
    return %arg0, %c0_i32 : i32, i32
  }
  func.func @transform_1(%arg0: i32) -> (i32, i32) {
    %c0_i32 = arith.constant 0 : i32
    %c0_i32_0 = arith.constant 0 : i32
    %c0_i32_1 = arith.constant 0 : i32
    return %c0_i32, %c0_i32_0 : i32, i32
  }
  func.func @transform_2(%arg0: i32) -> (i32, i32) {
    %c0_i32 = arith.constant 0 : i32
    %c0_i32_0 = arith.constant 0 : i32
    return %arg0, %c0_i32 : i32, i32
  }
}

</mosaic_0001>

<llo_original>
// kernel: tpu_custom_call.1
$region0: #{tpu_custom_call.1}
  #allocation0 [shape = 'u32[]', space=smem, size = 0x4, offset = 0x4, fixed_abs, tag = 'smem constant byte address 0x4 - core index']
  #allocation1 [shape = 'u32[72,128]{1,0:T(1,128)}', space=vmem, size = 0x9000, scoped, tag = 'internal scratch']
  %s0 = inlined_call_operand.vmem [shape: s32[16,8], index: 0, kind: input, shape index: {}]
  %s1 = inlined_call_operand.vmem [shape: f32[512,8], index: 1, kind: input, shape index: {}]
  %s2 = inlined_call_operand.vmem [shape: f32[16,8], index: 2, kind: output, shape index: {}]
  %s3 = sld [smem:[#allocation0]]
  $region18: #{tpu_custom_call.1} parent=0
    _
  %s5 = ssub.s32 1, %s3
  %s6 = scalar_select 0, %s5, %s3
  // Predicated region
  $region2: #{tpu_custom_call.1} parent=0 // pred_check
    _
  $region3: #{tpu_custom_call.1} parent=0 // pred_check_branch
    %8 = sbr.rel (0) target = $region5
  $region4: #{tpu_custom_call.1} parent=0 // pred_region
    _
  $region5: #{tpu_custom_call.1} parent=0 // pred_fallthru
    _
  // Predicated region
  $region6: #{tpu_custom_call.1} parent=0 // pred_check
    _
  $region7: #{tpu_custom_call.1} parent=0 // pred_check_branch
    %10 = sbr.rel (0) target = $region9
  $region8: #{tpu_custom_call.1} parent=0 // pred_region
    _
  $region9: #{tpu_custom_call.1} parent=0 // pred_fallthru
    _
  %v11 = vld [vmem:[%s0] sm:$0xff]
  %v12 = vld [vmem:[%s0 + $0x8] sm:$0xff]
  %v13 = vlaneseq
  %v14 = vand.u32 %v13, 127
  %v15 = vadd.s32 %v14, 128
  %v16 = vadd.s32 %v14, 256
  %v17 = vadd.s32 %v14, 384
  %18 = vset.pattern.permute.xlu0 0
  %19 = vperm.xlu0 %18, %v11
  %v20 = vpop.permute.xlu0 %19
  %21 = vset.pattern.permute.xlu0 0
  %22 = vperm.xlu0 %21, %v12
  %v23 = vpop.permute.xlu0 %22
  %vm24 = vcmp.eq.s32.totalorder %v14, %v20
  %vm25 = vcmp.eq.s32.totalorder %v15, %v20
  %vm26 = vcmp.eq.s32.totalorder %v16, %v20
  %vm27 = vcmp.eq.s32.totalorder %v17, %v20
  %vm28 = vcmp.eq.s32.totalorder %v14, %v23
  %vm29 = vcmp.eq.s32.totalorder %v15, %v23
  %vm30 = vcmp.eq.s32.totalorder %v16, %v23
  %vm31 = vcmp.eq.s32.totalorder %v17, %v23
  %32 = vset.pattern.permute.xlu0 1
  %33 = vperm.xlu0 %32, %v11
  %v34 = vpop.permute.xlu0 %33
  %35 = vset.pattern.permute.xlu0 1
  %36 = vperm.xlu0 %35, %v12
  %v37 = vpop.permute.xlu0 %36
  %vm38 = vcmp.eq.s32.totalorder %v14, %v34
  %vm39 = vcmp.eq.s32.totalorder %v15, %v34
  %vm40 = vcmp.eq.s32.totalorder %v16, %v34
  %vm41 = vcmp.eq.s32.totalorder %v17, %v34
  %vm42 = vcmp.eq.s32.totalorder %v14, %v37
  %vm43 = vcmp.eq.s32.totalorder %v15, %v37
  %vm44 = vcmp.eq.s32.totalorder %v16, %v37
  %vm45 = vcmp.eq.s32.totalorder %v17, %v37
  %vm46 = vmor %vm24, %vm38
  %vm47 = vmor %vm25, %vm39
  %vm48 = vmor %vm26, %vm40
  %vm49 = vmor %vm27, %vm41
  %vm50 = vmor %vm28, %vm42
  %vm51 = vmor %vm29, %vm43
  %vm52 = vmor %vm30, %vm44
  %vm53 = vmor %vm31, %vm45
  %54 = vset.pattern.permute.xlu0 2
  %55 = vperm.xlu0 %54, %v11
  %v56 = vpop.permute.xlu0 %55
  %57 = vset.pattern.permute.xlu0 2
  %58 = vperm.xlu0 %57, %v12
  %v59 = vpop.permute.xlu0 %58
  %vm60 = vcmp.eq.s32.totalorder %v14, %v56
  %vm61 = vcmp.eq.s32.totalorder %v15, %v56
  %vm62 = vcmp.eq.s32.totalorder %v16, %v56
  %vm63 = vcmp.eq.s32.totalorder %v17, %v56
  %vm64 = vcmp.eq.s32.totalorder %v14, %v59
  %vm65 = vcmp.eq.s32.totalorder %v15, %v59
  %vm66 = vcmp.eq.s32.totalorder %v16, %v59
  %vm67 = vcmp.eq.s32.totalorder %v17, %v59
  %vm68 = vmor %vm46, %vm60
  %vm69 = vmor %vm47, %vm61
  %vm70 = vmor %vm48, %vm62
  %vm71 = vmor %vm49, %vm63
  %vm72 = vmor %vm50, %vm64
  %vm73 = vmor %vm51, %vm65
  %vm74 = vmor %vm52, %vm66
  %vm75 = vmor %vm53, %vm67
  %76 = vset.pattern.permute.xlu0 3
  %77 = vperm.xlu0 %76, %v11
  %v78 = vpop.permute.xlu0 %77
  %79 = vset.pattern.permute.xlu0 3
  %80 = vperm.xlu0 %79, %v12
  %v81 = vpop.permute.xlu0 %80
  %vm82 = vcmp.eq.s32.totalorder %v14, %v78
  %vm83 = vcmp.eq.s32.totalorder %v15, %v78
  %vm84 = vcmp.eq.s32.totalorder %v16, %v78
  %vm85 = vcmp.eq.s32.totalorder %v17, %v78
  %vm86 = vcmp.eq.s32.totalorder %v14, %v81
  %vm87 = vcmp.eq.s32.totalorder %v15, %v81
  %vm88 = vcmp.eq.s32.totalorder %v16, %v81
  %vm89 = vcmp.eq.s32.totalorder %v17, %v81
  %vm90 = vmor %vm68, %vm82
  %vm91 = vmor %vm69, %vm83
  %vm92 = vmor %vm70, %vm84
  %vm93 = vmor %vm71, %vm85
  %vm94 = vmor %vm72, %vm86
  %vm95 = vmor %vm73, %vm87
  %vm96 = vmor %vm74, %vm88
  %vm97 = vmor %vm75, %vm89
  %98 = vset.pattern.permute.xlu0 4
  %99 = vperm.xlu0 %98, %v11
  %v100 = vpop.permute.xlu0 %99
  %101 = vset.pattern.permute.xlu0 4
  %102 = vperm.xlu0 %101, %v12
  %v103 = vpop.permute.xlu0 %102
  %vm104 = vcmp.eq.s32.totalorder %v14, %v100
  %vm105 = vcmp.eq.s32.totalorder %v15, %v100
  %vm106 = vcmp.eq.s32.totalorder %v16, %v100
  %vm107 = vcmp.eq.s32.totalorder %v17, %v100
  %vm108 = vcmp.eq.s32.totalorder %v14, %v103
  %vm109 = vcmp.eq.s32.totalorder %v15, %v103
  %vm110 = vcmp.eq.s32.totalorder %v16, %v103
  %vm111 = vcmp.eq.s32.totalorder %v17, %v103
  %vm112 = vmor %vm90, %vm104
  %vm113 = vmor %vm91, %vm105
  %vm114 = vmor %vm92, %vm106
  %vm115 = vmor %vm93, %vm107
  %vm116 = vmor %vm94, %vm108
  %vm117 = vmor %vm95, %vm109
  %vm118 = vmor %vm96, %vm110
  %vm119 = vmor %vm97, %vm111
  %120 = vset.pattern.permute.xlu0 5
  %121 = vperm.xlu0 %120, %v11
  %v122 = vpop.permute.xlu0 %121
  %123 = vset.pattern.permute.xlu0 5
  %124 = vperm.xlu0 %123, %v12
  %v125 = vpop.permute.xlu0 %124
  %vm126 = vcmp.eq.s32.totalorder %v14, %v122
  %vm127 = vcmp.eq.s32.totalorder %v15, %v122
  %vm128 = vcmp.eq.s32.totalorder %v16, %v122
  %vm129 = vcmp.eq.s32.totalorder %v17, %v122
  %vm130 = vcmp.eq.s32.totalorder %v14, %v125
  %vm131 = vcmp.eq.s32.totalorder %v15, %v125
  %vm132 = vcmp.eq.s32.totalorder %v16, %v125
  %vm133 = vcmp.eq.s32.totalorder %v17, %v125
  %vm134 = vmor %vm112, %vm126
  %vm135 = vmor %vm113, %vm127
  %vm136 = vmor %vm114, %vm128
  %vm137 = vmor %vm115, %vm129
  %vm138 = vmor %vm116, %vm130
  %vm139 = vmor %vm117, %vm131
  %vm140 = vmor %vm118, %vm132
  %vm141 = vmor %vm119, %vm133
  %142 = vset.pattern.permute.xlu0 6
  %143 = vperm.xlu0 %142, %v11
  %v144 = vpop.permute.xlu0 %143
  %145 = vset.pattern.permute.xlu0 6
  %146 = vperm.xlu0 %145, %v12
  %v147 = vpop.permute.xlu0 %146
  %vm148 = vcmp.eq.s32.totalorder %v14, %v144
  %vm149 = vcmp.eq.s32.totalorder %v15, %v144
  %vm150 = vcmp.eq.s32.totalorder %v16, %v144
  %vm151 = vcmp.eq.s32.totalorder %v17, %v144
  %vm152 = vcmp.eq.s32.totalorder %v14, %v147
  %vm153 = vcmp.eq.s32.totalorder %v15, %v147
  %vm154 = vcmp.eq.s32.totalorder %v16, %v147
  %vm155 = vcmp.eq.s32.totalorder %v17, %v147
  %vm156 = vmor %vm134, %vm148
  %vm157 = vmor %vm135, %vm149
  %vm158 = vmor %vm136, %vm150
  %vm159 = vmor %vm137, %vm151
  %vm160 = vmor %vm138, %vm152
  %vm161 = vmor %vm139, %vm153
  %vm162 = vmor %vm140, %vm154
  %vm163 = vmor %vm141, %vm155
  %164 = vset.pattern.permute.xlu0 7
  %165 = vperm.xlu0 %164, %v11
  %v166 = vpop.permute.xlu0 %165
  %167 = vset.pattern.permute.xlu0 7
  %168 = vperm.xlu0 %167, %v12
  %v169 = vpop.permute.xlu0 %168
  %vm170 = vcmp.eq.s32.totalorder %v14, %v166
  %vm171 = vcmp.eq.s32.totalorder %v15, %v166
  %vm172 = vcmp.eq.s32.totalorder %v16, %v166
  %vm173 = vcmp.eq.s32.totalorder %v17, %v166
  %vm174 = vcmp.eq.s32.totalorder %v14, %v169
  %vm175 = vcmp.eq.s32.totalorder %v15, %v169
  %vm176 = vcmp.eq.s32.totalorder %v16, %v169
  %vm177 = vcmp.eq.s32.totalorder %v17, %v169
  %vm178 = vmor %vm156, %vm170
  %vm179 = vmor %vm157, %vm171
  %vm180 = vmor %vm158, %vm172
  %vm181 = vmor %vm159, %vm173
  %vm182 = vmor %vm160, %vm174
  %vm183 = vmor %vm161, %vm175
  %vm184 = vmor %vm162, %vm176
  %vm185 = vmor %vm163, %vm177
  %v186 = vsel %vm178, 1, 0
  %v187 = vsel %vm179, 1, 0
  %v188 = vsel %vm180, 1, 0
  %v189 = vsel %vm181, 1, 0
  %v190 = vsel %vm182, 1, 0
  %v191 = vsel %vm183, 1, 0
  %v192 = vsel %vm184, 1, 0
  %v193 = vsel %vm185, 1, 0
  %v194 = vcvt.s32.f32 %v186
  %v195 = vcvt.s32.f32 %v187
  %v196 = vcvt.s32.f32 %v188
  %v197 = vcvt.s32.f32 %v189
  %v198 = vcvt.s32.f32 %v190
  %v199 = vcvt.s32.f32 %v191
  %v200 = vcvt.s32.f32 %v192
  %v201 = vcvt.s32.f32 %v193
  %v202 = vld [vmem:[%s1] sm:$0xff]
  %v203 = vld [vmem:[%s1 + $0x8] sm:$0xff]
  %v204 = vld [vmem:[%s1 + $0x10] sm:$0xff]
  %v205 = vld [vmem:[%s1 + $0x18] sm:$0xff]
  %v206 = vld [vmem:[%s1 + $0x20] sm:$0xff]
  %v207 = vld [vmem:[%s1 + $0x28] sm:$0xff]
  %v208 = vld [vmem:[%s1 + $0x30] sm:$0xff]
  %v209 = vld [vmem:[%s1 + $0x38] sm:$0xff]
  %v210 = vld [vmem:[%s1 + $0x40] sm:$0xff]
  %v211 = vld [vmem:[%s1 + $0x48] sm:$0xff]
  %v212 = vld [vmem:[%s1 + $0x50] sm:$0xff]
  %v213 = vld [vmem:[%s1 + $0x58] sm:$0xff]
  %v214 = vld [vmem:[%s1 + $0x60] sm:$0xff]
  %v215 = vld [vmem:[%s1 + $0x68] sm:$0xff]
  %v216 = vld [vmem:[%s1 + $0x70] sm:$0xff]
  %v217 = vld [vmem:[%s1 + $0x78] sm:$0xff]
  %v218 = vld [vmem:[%s1 + $0x80] sm:$0xff]
  %v219 = vld [vmem:[%s1 + $0x88] sm:$0xff]
  %v220 = vld [vmem:[%s1 + $0x90] sm:$0xff]
  %v221 = vld [vmem:[%s1 + $0x98] sm:$0xff]
  %v222 = vld [vmem:[%s1 + $0xa0] sm:$0xff]
  %v223 = vld [vmem:[%s1 + $0xa8] sm:$0xff]
  %v224 = vld [vmem:[%s1 + $0xb0] sm:$0xff]
  %v225 = vld [vmem:[%s1 + $0xb8] sm:$0xff]
  %v226 = vld [vmem:[%s1 + $0xc0] sm:$0xff]
  %v227 = vld [vmem:[%s1 + $0xc8] sm:$0xff]
  %v228 = vld [vmem:[%s1 + $0xd0] sm:$0xff]
  %v229 = vld [vmem:[%s1 + $0xd8] sm:$0xff]
  %v230 = vld [vmem:[%s1 + $0xe0] sm:$0xff]
  %v231 = vld [vmem:[%s1 + $0xe8] sm:$0xff]
  %v232 = vld [vmem:[%s1 + $0xf0] sm:$0xff]
  %v233 = vld [vmem:[%s1 + $0xf8] sm:$0xff]
  %v234 = vld [vmem:[%s1 + $0x100] sm:$0xff]
  %v235 = vld [vmem:[%s1 + $0x108] sm:$0xff]
  %v236 = vld [vmem:[%s1 + $0x110] sm:$0xff]
  %v237 = vld [vmem:[%s1 + $0x118] sm:$0xff]
  %v238 = vld [vmem:[%s1 + $0x120] sm:$0xff]
  %v239 = vld [vmem:[%s1 + $0x128] sm:$0xff]
  %v240 = vld [vmem:[%s1 + $0x130] sm:$0xff]
  %v241 = vld [vmem:[%s1 + $0x138] sm:$0xff]
  %v242 = vld [vmem:[%s1 + $0x140] sm:$0xff]
  %v243 = vld [vmem:[%s1 + $0x148] sm:$0xff]
  %v244 = vld [vmem:[%s1 + $0x150] sm:$0xff]
  %v245 = vld [vmem:[%s1 + $0x158] sm:$0xff]
  %v246 = vld [vmem:[%s1 + $0x160] sm:$0xff]
  %v247 = vld [vmem:[%s1 + $0x168] sm:$0xff]
  %v248 = vld [vmem:[%s1 + $0x170] sm:$0xff]
  %v249 = vld [vmem:[%s1 + $0x178] sm:$0xff]
  %v250 = vld [vmem:[%s1 + $0x180] sm:$0xff]
  %v251 = vld [vmem:[%s1 + $0x188] sm:$0xff]
  %v252 = vld [vmem:[%s1 + $0x190] sm:$0xff]
  %v253 = vld [vmem:[%s1 + $0x198] sm:$0xff]
  %v254 = vld [vmem:[%s1 + $0x1a0] sm:$0xff]
  %v255 = vld [vmem:[%s1 + $0x1a8] sm:$0xff]
  %v256 = vld [vmem:[%s1 + $0x1b0] sm:$0xff]
  %v257 = vld [vmem:[%s1 + $0x1b8] sm:$0xff]
  %v258 = vld [vmem:[%s1 + $0x1c0] sm:$0xff]
  %v259 = vld [vmem:[%s1 + $0x1c8] sm:$0xff]
  %v260 = vld [vmem:[%s1 + $0x1d0] sm:$0xff]
  %v261 = vld [vmem:[%s1 + $0x1d8] sm:$0xff]
  %v262 = vld [vmem:[%s1 + $0x1e0] sm:$0xff]
  %v263 = vld [vmem:[%s1 + $0x1e8] sm:$0xff]
  %v264 = vld [vmem:[%s1 + $0x1f0] sm:$0xff]
  %v265 = vld [vmem:[%s1 + $0x1f8] sm:$0xff]
  %266 = vmatpush.msra.mxu0 %v217
  %267 = vmatpush.msra.mxu0 %v216
  %268 = vmatpush.msra.mxu0 %v215
  %269 = vmatpush.msra.mxu0 %v214
  %270 = vmatpush.msra.mxu0 %v213
  %271 = vmatpush.msra.mxu0 %v212
  %272 = vmatpush.msra.mxu0 %v211
  %273 = vmatpush.msra.mxu0 %v210
  %274 = vmatpush.msra.mxu0 %v209
  %275 = vmatpush.msra.mxu0 %v208
  %276 = vmatpush.msra.mxu0 %v207
  %277 = vmatpush.msra.mxu0 %v206
  %278 = vmatpush.msra.mxu0 %v205
  %279 = vmatpush.msra.mxu0 %v204
  %280 = vmatpush.msra.mxu0 %v203
  %281 = vmatpush.msra.mxu0 %v202
  %282 = vmatmul.f32.gmra.mxu0 %v194
  %v283 = vpop.f32.mrf.mxu0
  %v284 = vadd.f32 0.0, %v283
  %285 = vmatmul.f32.gmra.mxu0 %v198
  %v286 = vpop.f32.mrf.mxu0
  %v287 = vadd.f32 0.0, %v286
  %288 = vdwg.mxu0
  %289 = vmatpush.msra.mxu0 %v233
  %290 = vmatpush.msra.mxu0 %v232
  %291 = vmatpush.msra.mxu0 %v231
  %292 = vmatpush.msra.mxu0 %v230
  %293 = vmatpush.msra.mxu0 %v229
  %294 = vmatpush.msra.mxu0 %v228
  %295 = vmatpush.msra.mxu0 %v227
  %296 = vmatpush.msra.mxu0 %v226
  %297 = vmatpush.msra.mxu0 %v225
  %298 = vmatpush.msra.mxu0 %v224
  %299 = vmatpush.msra.mxu0 %v223
  %300 = vmatpush.msra.mxu0 %v222
  %301 = vmatpush.msra.mxu0 %v221
  %302 = vmatpush.msra.mxu0 %v220
  %303 = vmatpush.msra.mxu0 %v219
  %304 = vmatpush.msra.mxu0 %v218
  %305 = vmatmul.f32.gmra.mxu0 %v195
  %v306 = vpop.f32.mrf.mxu0
  %v307 = vadd.f32 %v284, %v306
  %308 = vmatmul.f32.gmra.mxu0 %v199
  %v309 = vpop.f32.mrf.mxu0
  %v310 = vadd.f32 %v287, %v309
  %311 = vdwg.mxu0
  %312 = vmatpush.msra.mxu0 %v249
  %313 = vmatpush.msra.mxu0 %v248
  %314 = vmatpush.msra.mxu0 %v247
  %315 = vmatpush.msra.mxu0 %v246
  %316 = vmatpush.msra.mxu0 %v245
  %317 = vmatpush.msra.mxu0 %v244
  %318 = vmatpush.msra.mxu0 %v243
  %319 = vmatpush.msra.mxu0 %v242
  %320 = vmatpush.msra.mxu0 %v241
  %321 = vmatpush.msra.mxu0 %v240
  %322 = vmatpush.msra.mxu0 %v239
  %323 = vmatpush.msra.mxu0 %v238
  %324 = vmatpush.msra.mxu0 %v237
  %325 = vmatpush.msra.mxu0 %v236
  %326 = vmatpush.msra.mxu0 %v235
  %327 = vmatpush.msra.mxu0 %v234
  %328 = vmatmul.f32.gmra.mxu0 %v196
  %v329 = vpop.f32.mrf.mxu0
  %v330 = vadd.f32 %v307, %v329
  %331 = vmatmul.f32.gmra.mxu0 %v200
  %v332 = vpop.f32.mrf.mxu0
  %v333 = vadd.f32 %v310, %v332
  %334 = vdwg.mxu0
  %335 = vmatpush.msra.mxu0 %v265
  %336 = vmatpush.msra.mxu0 %v264
  %337 = vmatpush.msra.mxu0 %v263
  %338 = vmatpush.msra.mxu0 %v262
  %339 = vmatpush.msra.mxu0 %v261
  %340 = vmatpush.msra.mxu0 %v260
  %341 = vmatpush.msra.mxu0 %v259
  %342 = vmatpush.msra.mxu0 %v258
  %343 = vmatpush.msra.mxu0 %v257
  %344 = vmatpush.msra.mxu0 %v256
  %345 = vmatpush.msra.mxu0 %v255
  %346 = vmatpush.msra.mxu0 %v254
  %347 = vmatpush.msra.mxu0 %v253
  %348 = vmatpush.msra.mxu0 %v252
  %349 = vmatpush.msra.mxu0 %v251
  %350 = vmatpush.msra.mxu0 %v250
  %351 = vmatmul.f32.gmra.mxu0 %v197
  %v352 = vpop.f32.mrf.mxu0
  %v353 = vadd.f32 %v330, %v352
  %354 = vmatmul.f32.gmra.mxu0 %v201
  %v355 = vpop.f32.mrf.mxu0
  %v356 = vadd.f32 %v333, %v355
  %357 = vdwg.mxu0
  %vm358 = vcmask 64512
  %359 = vst.msk [vmem:[%s2] sm:$0xff] %vm358, %v353
  %360 = vst.msk [vmem:[%s2 + $0x8] sm:$0xff] %vm358, %v356
  // Predicated region
  $region10: #{tpu_custom_call.1} parent=0 // pred_check
    _
  $region11: #{tpu_custom_call.1} parent=0 // pred_check_branch
    %362 = sbr.rel (0) target = $region13
  $region12: #{tpu_custom_call.1} parent=0 // pred_region
    _
  $region13: #{tpu_custom_call.1} parent=0 // pred_fallthru
    _
  // Predicated region
  $region14: #{tpu_custom_call.1} parent=0 // pred_check
    _
  $region15: #{tpu_custom_call.1} parent=0 // pred_check_branch
    %364 = sbr.rel (0) target = $region17
  $region16: #{tpu_custom_call.1} parent=0 // pred_region
    _
  $region17: #{tpu_custom_call.1} parent=0 // pred_fallthru
    _

</llo_original>
